<compile_context>
chip_gen: v7x
topology: tpu7x:2x2x1
jax: 0.10.0
libtpu: 0.0.40
codegen_flags: <defaults>
</compile_context>

<pallas_src>
import math
import functools

import numpy as np
import jax
import jax.numpy as jnp
from jax.experimental import pallas as pl
from jax.experimental.pallas import tpu as pltpu


def _pos_embed_kernel(x_ref, sel_ref, ph_ref, out_ref, *, fold):
    """One (batch b, L-tile l) grid step — pure elementwise work, no scratch.

    x_ref   : (1, tlf, fold)    f32  x_embed values (normalize already applied),
                                     `fold` consecutive positions packed per output row
    sel_ref : (1, fold, foldF)  f32  sel[j, j*F + k] = 1/dim_t[k], 0 elsewhere
    ph_ref  : (1, 1, foldF)     f32  phase: 0 for even features (sin), pi/2 for odd (cos)
    out_ref : (1, tlf, foldF)   f32
    """
    x = x_ref[0]                                   # (tlf, fold)
    sel = sel_ref[0]                               # (fold, foldF)

    # Outer-product expansion: acc[r, j*F + k] = x[r, j] * inv_dim_t[k].
    acc = x[:, 0:1] * sel[0:1, :]                  # (tlf, foldF)
    for j in range(1, fold):
        acc = acc + x[:, j:j + 1] * sel[j:j + 1, :]

    # Single transcendental per output element (cos == sin(. + pi/2)).
    out_ref[0] = jnp.sin(acc + ph_ref[0])


def position_embedding_sine(mask, num_pos_feats=64, temperature=10000,
                            normalize=False, scale=None, eps=1e-6):
    """mask: (B, L) array (1 = valid). Returns (B, L, num_pos_feats) float32."""
    if scale is not None and normalize is False:
        raise ValueError('normalize should be True if scale is passed')
    if scale is None:
        scale = 2 * math.pi

    F = int(num_pos_feats)
    B, L = mask.shape

    # ---- hoisted prefix-sum: O(B*L), negligible vs. the O(B*L*F) output ----
    x_embed = jnp.cumsum(mask.astype(jnp.float32), axis=1)
    if normalize:
        x_embed = x_embed / (x_embed[:, -1:] + eps) * jnp.float32(scale)

    # ---- lane-dense folding: pack `fold` consecutive positions per output row so the
    #      last (lane) dim is fold*F, a multiple of 128 whenever possible ----
    fold = 128 // math.gcd(F, 128)
    if L % fold != 0:
        fold = 1                              # still correct, just not lane-dense
    foldF = fold * F
    Lf = L // fold

    # ---- rows per tile: ~1 MiB output tiles, multiple of 8 sublanes ----
    tlf = max(8, min(4096, ((1 << 20) // (foldF * 4) // 8) * 8))
    if Lf <= tlf:
        tlf = ((Lf + 7) // 8) * 8
    lf_pad = ((Lf + tlf - 1) // tlf) * tlf
    n_l = lf_pad // tlf

    pad = lf_pad * fold - L
    if pad:
        x_embed = jnp.pad(x_embed, ((0, 0), (0, pad)))   # padded rows are sliced off later
    x_folded = x_embed.reshape(B, lf_pad, fold)

    # ---- host-side constants: scaled per-fold selectors and the sin phase ----
    k = np.arange(F, dtype=np.float64)
    dim_t = np.asarray(float(temperature), dtype=np.float64) ** (2.0 * np.floor(k / 2.0) / F)
    inv_dim_t = (1.0 / dim_t).astype(np.float32)                      # (F,)
    sel_np = np.zeros((fold, foldF), dtype=np.float32)
    for j in range(fold):
        sel_np[j, j * F:(j + 1) * F] = inv_dim_t
    ph_np = np.tile(np.where(k % 2 == 0, 0.0, np.pi / 2.0).astype(np.float32), fold)

    sel_arr = jnp.asarray(sel_np).reshape(1, fold, foldF)
    ph_arr = jnp.asarray(ph_np).reshape(1, 1, foldF)

    kernel = functools.partial(_pos_embed_kernel, fold=fold)

    # VMEM budget: double-buffered output tile + double-buffered (lane-padded) x tile
    # + generous headroom for the tiny constants / internal scratch.
    out_tile_bytes = tlf * foldF * 4
    in_tile_bytes = tlf * max(128, fold) * 4
    vmem_limit = 2 * out_tile_bytes + 2 * in_tile_bytes + (8 << 20)

    grid_spec = pltpu.PrefetchScalarGridSpec(
        num_scalar_prefetch=0,
        grid=(B, n_l),
        in_specs=[
            pl.BlockSpec((1, tlf, fold), lambda b, l: (b, l, 0)),
            pl.BlockSpec((1, fold, foldF), lambda b, l: (0, 0, 0)),
            pl.BlockSpec((1, 1, foldF), lambda b, l: (0, 0, 0)),
        ],
        out_specs=pl.BlockSpec((1, tlf, foldF), lambda b, l: (b, l, 0)),
    )

    out_padded = pl.pallas_call(
        kernel,
        out_shape=jax.ShapeDtypeStruct((B, lf_pad, foldF), jnp.float32),
        grid_spec=grid_spec,
        compiler_params=pltpu.CompilerParams(
            dimension_semantics=("parallel", "parallel"),
            vmem_limit_bytes=vmem_limit),
        cost_estimate=pl.CostEstimate(
            flops=4 * B * lf_pad * foldF,
            transcendentals=B * lf_pad * foldF,
            bytes_accessed=4 * B * lf_pad * (fold + foldF)),
    )(x_folded, sel_arr, ph_arr)

    # Free contiguous reshape back to (B, L, F); drop any padded rows.
    return out_padded[:, :Lf, :].reshape(B, L, F)


def _reference(mask, num_pos_feats=64, temperature=10000, normalize=False, scale=None):
    # Pure-JAX reference mirroring the PyTorch forward exactly.
    if scale is None:
        scale = 2 * math.pi
    x_embed = jnp.cumsum(mask.astype(jnp.float32), axis=1)
    if normalize:
        eps = 1e-6
        x_embed = x_embed / (x_embed[:, -1:] + eps) * scale
    dim_t = jnp.arange(num_pos_feats, dtype=jnp.float32)
    dim_t = temperature ** (2 * jnp.floor(dim_t / 2) / num_pos_feats)
    pos_x = x_embed[:, :, None] / dim_t
    pos_x = jnp.stack((jnp.sin(pos_x[:, :, 0::2]),
                       jnp.cos(pos_x[:, :, 1::2])), axis=3).reshape(
                           pos_x.shape[0], pos_x.shape[1], -1)
    return pos_x


if __name__ == "__main__":
    key = jax.random.PRNGKey(0)
    B, L, d = 2, 8, 32
    num_pos_feats = 64

    kx, km = jax.random.split(key)
    x = jax.random.normal(kx, (B, L, d), dtype=jnp.float32)     # unused by the forward math
    # mask: 1 for valid positions, 0 for padding (same convention as the PyTorch mask)
    mask = (jax.random.uniform(km, (B, L)) > 0.25).astype(jnp.float32)

    out = position_embedding_sine(mask, num_pos_feats=num_pos_feats)
    out = jax.block_until_ready(out)
    ref = _reference(mask, num_pos_feats=num_pos_feats)
    assert out.shape == (B, L, num_pos_feats)
    assert jnp.allclose(out, ref, atol=1e-4, rtol=1e-4)

    out_n = position_embedding_sine(mask, num_pos_feats=num_pos_feats, normalize=True)
    out_n = jax.block_until_ready(out_n)
    ref_n = _reference(mask, num_pos_feats=num_pos_feats, normalize=True)
    assert jnp.allclose(out_n, ref_n, atol=1e-4, rtol=1e-4)

    print("KERNEL_OK")
</pallas_src>

<mosaic_0001>
module attributes {stable_mosaic.version = 11 : i64} {
  func.func @_pos_embed_kernel(%arg0: i32, %arg1: i32, %arg2: memref<1x8x2xf32, #tpu.memory_space<vmem>>, %arg3: memref<1x2x128xf32, #tpu.memory_space<vmem>>, %arg4: memref<1x1x128xf32, #tpu.memory_space<vmem>>, %arg5: memref<1x8x128xf32, #tpu.memory_space<vmem>>) attributes {dimension_semantics = [#tpu.dimension_semantics<parallel>, #tpu.dimension_semantics<parallel>], iteration_bounds = array<i64: 2, 1>, scalar_prefetch = 0 : i64, scratch_operands = 0 : i64, tpu.core_type = #tpu.core_type<tc>, window_params = [{transform_indices = @transform_0, window_bounds = array<i64: 1, 8, 2>}, {pipeline_mode = #tpu.pipeline_mode<synchronous>, transform_indices = @transform_1, window_bounds = array<i64: 1, 2, 128>}, {pipeline_mode = #tpu.pipeline_mode<synchronous>, transform_indices = @transform_2, window_bounds = array<i64: 1, 1, 128>}, {transform_indices = @transform_3, window_bounds = array<i64: 1, 8, 128>}]} {
    %c0 = arith.constant 0 : index
    %c0_0 = arith.constant 0 : index
    %c0_1 = arith.constant 0 : index
    %0 = vector.load %arg2[%c0, %c0_0, %c0_1] : memref<1x8x2xf32, #tpu.memory_space<vmem>>, vector<1x8x2xf32>
    %1 = vector.shape_cast %0 : vector<1x8x2xf32> to vector<8x2xf32>
    %c0_2 = arith.constant 0 : index
    %c0_3 = arith.constant 0 : index
    %c0_4 = arith.constant 0 : index
    %2 = vector.load %arg3[%c0_2, %c0_3, %c0_4] : memref<1x2x128xf32, #tpu.memory_space<vmem>>, vector<1x2x128xf32>
    %3 = vector.shape_cast %2 : vector<1x2x128xf32> to vector<2x128xf32>
    %4 = vector.extract_strided_slice %1 {offsets = [0, 0], sizes = [8, 1], strides = [1, 1]} : vector<8x2xf32> to vector<8x1xf32>
    %5 = vector.extract_strided_slice %3 {offsets = [0, 0], sizes = [1, 128], strides = [1, 1]} : vector<2x128xf32> to vector<1x128xf32>
    %6 = vector.broadcast %4 : vector<8x1xf32> to vector<8x128xf32>
    %7 = vector.broadcast %5 : vector<1x128xf32> to vector<8x128xf32>
    %8 = arith.mulf %6, %7 : vector<8x128xf32>
    %9 = vector.extract_strided_slice %1 {offsets = [0, 1], sizes = [8, 1], strides = [1, 1]} : vector<8x2xf32> to vector<8x1xf32>
    %10 = vector.extract_strided_slice %3 {offsets = [1, 0], sizes = [1, 128], strides = [1, 1]} : vector<2x128xf32> to vector<1x128xf32>
    %11 = vector.broadcast %9 : vector<8x1xf32> to vector<8x128xf32>
    %12 = vector.broadcast %10 : vector<1x128xf32> to vector<8x128xf32>
    %13 = arith.mulf %11, %12 : vector<8x128xf32>
    %14 = arith.addf %8, %13 : vector<8x128xf32>
    %c0_5 = arith.constant 0 : index
    %c0_6 = arith.constant 0 : index
    %c0_7 = arith.constant 0 : index
    %15 = vector.load %arg4[%c0_5, %c0_6, %c0_7] : memref<1x1x128xf32, #tpu.memory_space<vmem>>, vector<1x1x128xf32>
    %16 = vector.shape_cast %15 : vector<1x1x128xf32> to vector<1x128xf32>
    %17 = vector.broadcast %16 : vector<1x128xf32> to vector<8x128xf32>
    %18 = arith.addf %14, %17 : vector<8x128xf32>
    %19 = math.sin %18 : vector<8x128xf32>
    %c0_8 = arith.constant 0 : index
    %c0_9 = arith.constant 0 : index
    %c0_10 = arith.constant 0 : index
    %20 = vector.load %arg5[%c0_8, %c0_9, %c0_10] : memref<1x8x128xf32, #tpu.memory_space<vmem>>, vector<1x8x128xf32>
    %21 = vector.shape_cast %20 : vector<1x8x128xf32> to vector<8x128xf32>
    %22 = vector.shape_cast %19 : vector<8x128xf32> to vector<1x8x128xf32>
    tpu.vector_store %arg5[%c0_8, %c0_9, %c0_10], %22 {strides = array<i32>} : memref<1x8x128xf32, #tpu.memory_space<vmem>>, vector<1x8x128xf32>,
    return
  }
  func.func @transform_0(%arg0: i32, %arg1: i32) -> (i32, i32, i32) {
    %c0_i32 = arith.constant 0 : i32
    %c0_i32_0 = arith.constant 0 : i32
    return %arg0, %arg1, %c0_i32 : i32, i32, i32
  }
  func.func @transform_1(%arg0: i32, %arg1: i32) -> (i32, i32, i32) {
    %c0_i32 = arith.constant 0 : i32
    %c0_i32_0 = arith.constant 0 : i32
    %c0_i32_1 = arith.constant 0 : i32
    %c0_i32_2 = arith.constant 0 : i32
    return %c0_i32, %c0_i32_0, %c0_i32_1 : i32, i32, i32
  }
  func.func @transform_2(%arg0: i32, %arg1: i32) -> (i32, i32, i32) {
    %c0_i32 = arith.constant 0 : i32
    %c0_i32_0 = arith.constant 0 : i32
    %c0_i32_1 = arith.constant 0 : i32
    %c0_i32_2 = arith.constant 0 : i32
    return %c0_i32, %c0_i32_0, %c0_i32_1 : i32, i32, i32
  }
  func.func @transform_3(%arg0: i32, %arg1: i32) -> (i32, i32, i32) {
    %c0_i32 = arith.constant 0 : i32
    %c0_i32_0 = arith.constant 0 : i32
    return %arg0, %arg1, %c0_i32 : i32, i32, i32
  }
}

</mosaic_0001>

<llo_original>
// kernel: tpu_custom_call.1
$region0: #{tpu_custom_call.1}
  #allocation0 [shape = 'u32[]', space=smem, size = 0x4, offset = 0x4, fixed_abs, tag = 'smem constant byte address 0x4 - core index']
  #allocation1 [shape = 'u32[144,128]{1,0:T(1,128)}', space=vmem, size = 0x12000, scoped, tag = 'internal scratch']
  %s0 = inlined_call_operand.vmem [shape: f32[2,8,2], index: 0, kind: input, shape index: {}]
  %s1 = inlined_call_operand.vmem [shape: f32[1,2,128], index: 1, kind: input, shape index: {}]
  %s2 = inlined_call_operand.vmem [shape: f32[1,1,128], index: 2, kind: input, shape index: {}]
  %s3 = inlined_call_operand.hbm [shape: f32[2,8,128], index: 3, kind: output, shape index: {}]
  %s4 = sld [smem:[#allocation0]]
  $region45: #{tpu_custom_call.1} parent=0
    _
  %s6 = ssub.s32 1, %s4
  %s7 = scalar_select 0, %s6, %s4
  $region1: #{tpu_custom_call.1} parent=0
    #allocation2 [shape = 'u8[8192]{0}', space=vmem, size = 0x2000, scoped, tag = 'output window, operand 0']
    #allocation3 [shape = 's32[2]{0}', space=sflag, size = 0x8, scoped, tag = 'scoped memory for tpu_custom_call.1']
    %8 = vsyncpa [#allocation3], 0
    %s9 = scalar_lea.sflag [#allocation3], 1
    %10 = vsyncpa %s9, 0
    loop: start=0, step=1, limit=4
    $region2: #{tpu_custom_call.1} parent=1 // loop_pre_header
      _
    $region3: #{tpu_custom_call.1} parent=1 // loop_header
      %s12 = sphi 0, %s16
      %p13 = scmp.ge.s32.totalorder %s12, 4
      %s19 = sphi 0, %s31
      %s20 = sphi 0, %s27
      %s21 = sphi 0, %s19
      %s22 = sphi 0, %s20
      %s23 = sphi 0, %s21
      %s24 = sphi 0, %s22
      %s36 = sphi 0, %s38
      %s39 = sphi 0, %s36
      %s40 = sphi 0, %s39
      %s56 = sphi 0, %s40
      %s60 = sphi 0, %s60
      %s62 = sphi 0, %s60
      %s63 = sphi 0, %s62
      %s77 = sphi 0, %s63
      %s81 = sphi 0, %s81
      %s83 = sphi 0, %s81
      %s84 = sphi 0, %s83
      %s98 = sphi 0, %s84
      %s106 = sphi 0, %s108
      %s109 = sphi 0, %s106
      %s110 = sphi 0, %s109
      %s126 = sphi 0, %s110
    $region4: #{tpu_custom_call.1} parent=1 // loop_header_branch
      %15 = sbr.rel (%p13) target = $region8
    $region5: #{tpu_custom_call.1} parent=1 // loop_body
      %s17 = ssub.s32 %s12, 1
      %s18 = ssub.s32 %s12, 2
      %s25 = sadd.s32 1, %s20
      %p26 = scmp.ge.s32.totalorder %s25, 1
      %s27 = scalar_select %p26, 0, %s25
      %s28 = sadd.s32 1, %s19
      %s29 = scalar_select %p26, %s28, %s19
      %p30 = scmp.ge.s32.totalorder %s29, 2
      %s31 = scalar_select %p30, 0, %s29
      %s32 = ssub.s32 %s19, %s31
      %s33 = ssub.s32 %s20, %s27
      %s34 = sor.u32 %s32, %s33
      %p35 = scmp.eq.s32.totalorder %s34, 0
      %s37 = sadd.s32 %s36, 1
      %s38 = scalar_select %p35, %s36, %s37
      %p41 = pneg %p35
      %p42 = scmp.eq.s32.totalorder %s12, 1
      %p43 = por %p41, %p42
      %p44 = scmp.ne.s32.totalorder %s36, %s39
      %p45 = scmp.eq.s32.totalorder %s12, 0
      %p46 = por %p44, %p45
      %p47 = scmp.ne.s32.totalorder %s36, %s39
      %p48 = scmp.eq.s32.totalorder %s17, 1
      %p49 = por %p47, %p48
      %p50 = scmp.ne.s32.totalorder %s39, %s40
      %p51 = scmp.eq.s32.totalorder %s17, 0
      %p52 = por %p50, %p51
      %p53 = scmp.ne.s32.totalorder %s39, %s40
      %p54 = scmp.eq.s32.totalorder %s18, 1
      %p55 = por %p53, %p54
      %p57 = scmp.ne.s32.totalorder %s40, %s56
      %p58 = scmp.eq.s32.totalorder %s18, 0
      %p59 = por %p57, %p58
      %s61 = sadd.s32 %s60, 1
      %p64 = scmp.eq.s32.totalorder %s12, 1
      %p65 = scmp.ne.s32.totalorder %s60, %s62
      %p66 = scmp.eq.s32.totalorder %s12, 0
      %p67 = por %p65, %p66
      %p68 = scmp.ne.s32.totalorder %s60, %s62
      %p69 = scmp.eq.s32.totalorder %s17, 1
      %p70 = por %p68, %p69
      %p71 = scmp.ne.s32.totalorder %s62, %s63
      %p72 = scmp.eq.s32.totalorder %s17, 0
      %p73 = por %p71, %p72
      %p74 = scmp.ne.s32.totalorder %s62, %s63
      %p75 = scmp.eq.s32.totalorder %s18, 1
      %p76 = por %p74, %p75
      %p78 = scmp.ne.s32.totalorder %s63, %s77
      %p79 = scmp.eq.s32.totalorder %s18, 0
      %p80 = por %p78, %p79
      %s82 = sadd.s32 %s81, 1
      %p85 = scmp.eq.s32.totalorder %s12, 1
      %p86 = scmp.ne.s32.totalorder %s81, %s83
      %p87 = scmp.eq.s32.totalorder %s12, 0
      %p88 = por %p86, %p87
      %p89 = scmp.ne.s32.totalorder %s81, %s83
      %p90 = scmp.eq.s32.totalorder %s17, 1
      %p91 = por %p89, %p90
      %p92 = scmp.ne.s32.totalorder %s83, %s84
      %p93 = scmp.eq.s32.totalorder %s17, 0
      %p94 = por %p92, %p93
      %p95 = scmp.ne.s32.totalorder %s83, %s84
      %p96 = scmp.eq.s32.totalorder %s18, 1
      %p97 = por %p95, %p96
      %p99 = scmp.ne.s32.totalorder %s84, %s98
      %p100 = scmp.eq.s32.totalorder %s18, 0
      %p101 = por %p99, %p100
      %s102 = ssub.s32 %s19, %s31
      %s103 = ssub.s32 %s20, %s27
      %s104 = sor.u32 %s102, %s103
      %p105 = scmp.eq.s32.totalorder %s104, 0
      %s107 = sadd.s32 %s106, 1
      %s108 = scalar_select %p105, %s106, %s107
      %p111 = pneg %p105
      %p112 = scmp.eq.s32.totalorder %s12, 1
      %p113 = por %p111, %p112
      %p114 = scmp.ne.s32.totalorder %s106, %s109
      %p115 = scmp.eq.s32.totalorder %s12, 0
      %p116 = por %p114, %p115
      %p117 = scmp.ne.s32.totalorder %s106, %s109
      %p118 = scmp.eq.s32.totalorder %s17, 1
      %p119 = por %p117, %p118
      %p120 = scmp.ne.s32.totalorder %s109, %s110
      %p121 = scmp.eq.s32.totalorder %s17, 0
      %p122 = por %p120, %p121
      %p123 = scmp.ne.s32.totalorder %s109, %s110
      %p124 = scmp.eq.s32.totalorder %s18, 1
      %p125 = por %p123, %p124
      %p127 = scmp.ne.s32.totalorder %s110, %s126
      %p128 = scmp.eq.s32.totalorder %s18, 0
      %p129 = por %p127, %p128
      %p130 = scmp.le.s32.totalorder 1, %s12
      %p131 = scmp.lt.s32.totalorder %s12, 3
      %p132 = pnand %p130, %p131
      %p133 = pneg %p132
      // Predicated region
      $region9: #{tpu_custom_call.1} parent=5 // pred_check
        _
      $region10: #{tpu_custom_call.1} parent=5 // pred_check_branch
        %135 = sbr.rel (%p132) target = $region12
      $region11: #{tpu_custom_call.1} parent=5 // pred_region
        %s136 = ssub.s32 %s12, 1
        // Predicated region
        $region13: #{tpu_custom_call.1} parent=11 // pred_check
          %p137 = pneg %p73
        $region14: #{tpu_custom_call.1} parent=11 // pred_check_branch
          %139 = sbr.rel (%p137) target = $region16
        $region15: #{tpu_custom_call.1} parent=11 // pred_region
          _
        $region16: #{tpu_custom_call.1} parent=11 // pred_fallthru
          _
        // Predicated region
        $region17: #{tpu_custom_call.1} parent=11 // pred_check
          %p140 = pneg %p94
        $region18: #{tpu_custom_call.1} parent=11 // pred_check_branch
          %142 = sbr.rel (%p140) target = $region20
        $region19: #{tpu_custom_call.1} parent=11 // pred_region
          _
        $region20: #{tpu_custom_call.1} parent=11 // pred_fallthru
          _
      $region12: #{tpu_custom_call.1} parent=5 // pred_fallthru
        _
      %p143 = scmp.lt.s32.totalorder %s12, 2
      // Predicated region
      $region21: #{tpu_custom_call.1} parent=5 // pred_check
        %p144 = pneg %p143
      $region22: #{tpu_custom_call.1} parent=5 // pred_check_branch
        %146 = sbr.rel (%p144) target = $region24
      $region23: #{tpu_custom_call.1} parent=5 // pred_region
        // Predicated region
        $region25: #{tpu_custom_call.1} parent=23 // pred_check
          %p147 = pneg %p46
        $region26: #{tpu_custom_call.1} parent=23 // pred_check_branch
          %149 = sbr.rel (%p147) target = $region28
        $region27: #{tpu_custom_call.1} parent=23 // pred_region
          %p150 = scmp.lt.s32.totalorder %s19, 1
          %s151 = scalar_select %p150, %s19, 1
          %p152 = scmp.lt.s32.totalorder %s20, 0
          %s153 = scalar_select %p152, %s20, 0
          %s154 = sadd.s32 %s153, %s151
          %s155 = smul.addr %s154, 8
          %s156 = scalar_lea.vmem %s0, %s155
        $region28: #{tpu_custom_call.1} parent=23 // pred_fallthru
          _
      $region24: #{tpu_custom_call.1} parent=5 // pred_fallthru
        _
      %p157 = scmp.le.s32.totalorder 1, %s12
      %p158 = scmp.lt.s32.totalorder %s12, 3
      %p159 = pnand %p157, %p158
      %p160 = pneg %p159
      // Predicated region
      $region29: #{tpu_custom_call.1} parent=5 // pred_check
        _
      $region30: #{tpu_custom_call.1} parent=5 // pred_check_branch
        %162 = sbr.rel (%p159) target = $region32
      $region31: #{tpu_custom_call.1} parent=5 // pred_region
        %s163 = ssub.s32 %s12, 1
        %p164 = scmp.lt.s32.totalorder %s21, 1
        %s165 = scalar_select %p164, %s21, 1
        %p166 = scmp.lt.s32.totalorder %s22, 0
        %s167 = scalar_select %p166, %s22, 0
        %s168 = sadd.s32 %s167, %s165
        %s169 = smul.addr %s168, 8
        %s170 = scalar_lea.vmem %s0, %s169
        %p171 = pneg %p52
        %p172 = pneg %p49
        %p173 = pneg %p73
        %p174 = pneg %p70
        %p175 = pneg %p94
        %p176 = pneg %p91
        %p177 = pneg %p122
        %p178 = pneg %p119
        %s179 = sand.u32 %s109, 1
        %s180 = scalar_lea.sflag [#allocation3], %s179
        %s181 = sand.u32 %s109, 1
        %s182 = smul.addr %s181, 8
        %s183 = scalar_lea.vmem [#allocation2], %s182
        %p184 = scmp.lt.s32.totalorder %s21, 1
        %s185 = scalar_select %p184, %s21, 1
        %p186 = scmp.lt.s32.totalorder %s22, 0
        %s187 = scalar_select %p186, %s22, 0
        %s188 = sadd.s32 %s187, %s185
        %s189 = smul.addr %s188, 8
        %s190 = scalar_lea.vmem %s0, %s189
        %v191 = vld [vmem:[%s190] sm:$0xff]
        %v192 = vld [vmem:[%s1] sm:$0x3]
        %194 = vset.pattern.permute.xlu0 0
        %195 = vperm.xlu0 %194, %v191
        %v196 = vpop.permute.xlu0 %195
        %v198 = vlaneseq
        %v199 = vshrl.u32 %v198, 7
        %v200 = vsub.s32 0, %v199
        %v201 = vrot.slane %v192, %v200
        %v202 = vmul.f32 %v196, %v201
        %203 = vset.pattern.permute.xlu0 1
        %204 = vperm.xlu0 %203, %v191
        %v205 = vpop.permute.xlu0 %204
        %v207 = vlaneseq
        %v208 = vshrl.u32 %v207, 7
        %v209 = vsub.s32 1, %v208
        %v210 = vrot.slane %v192, %v209
        %v211 = vmul.f32 %v205, %v210
        %v212 = vadd.f32 %v202, %v211
        %v213 = vld [vmem:[%s2] sm:$0x1]
        %v215 = vlaneseq
        %v216 = vshrl.u32 %v215, 7
        %v217 = vsub.s32 0, %v216
        %v218 = vrot.slane %v213, %v217
        %v220 = vadd.f32 %v212, %v218
        %v221 = vand.u32 2147483647, %v220
        %vm222 = vcmp.le.f32.partialorder %v221, 0.7853982
        %vm223 = vcmp.lt.s32.totalorder %v220, 0
        %v224 = vand.u32 %v220, 2139095040
        %v225 = vshrl.u32 %v224, 23
        %v226 = vsub.s32 %v225, 127
        %v227 = vand.u32 2147483647, %v220
        %v228 = vand.u32 %v227, 8388607
        %v229 = vor.u32 %v228, 8388608
        %v230 = vsub.s32 0, %v229
        %v231 = vadd.s32 %v226, 1
        %vm232 = vcmp.gt.s32.totalorder %v231, 0
        %v233 = vsel %vm232, %v231, 0
        %v234 = vshrl.u32 %v233, 5
        %v235 = vand.u32 %v233, 31
        %v236 = vsub.s32 32, %v235
        %v237 = vshrl.u32 683565275, %v236
        %v238 = vshll.u32 683565275, %v235
        %v239 = vshrl.u32 2475754826, %v236
        %v240 = vor.u32 %v238, %v239
        %v241 = vshll.u32 2475754826, %v235
        %v242 = vshrl.u32 2131351028, %v236
        %v243 = vor.u32 %v241, %v242
        %v244 = vshll.u32 2131351028, %v235
        %v245 = vshrl.u32 2102212464, %v236
        %v246 = vor.u32 %v244, %v245
        %v247 = vshll.u32 2102212464, %v235
        %v248 = vshrl.u32 920167782, %v236
        %v249 = vor.u32 %v247, %v248
        %v250 = vshll.u32 920167782, %v235
        %v251 = vshrl.u32 1326507024, %v236
        %v252 = vor.u32 %v250, %v251
        %vm253 = vcmp.lt.s32.totalorder %v234, 1
        %vm254 = vcmp.lt.s32.totalorder %v234, 2
        %vm255 = vcmp.lt.s32.totalorder %v234, 3
        %vm256 = vcmp.lt.s32.totalorder %v234, 4
        %v257 = vsel %vm253, %v237, %v240
        %v258 = vsel %vm256, %v246, 2102212464
        %v259 = vsel %vm255, %v243, %v258
        %v260 = vsel %vm254, %v257, %v259
        %v261 = vsel %vm253, %v240, %v243
        %v262 = vsel %vm256, %v249, 920167782
        %v263 = vsel %vm255, %v246, %v262
        %v264 = vsel %vm254, %v261, %v263
        %v265 = vsel %vm253, %v243, %v246
        %v266 = vsel %vm256, %v252, 1326507024
        %v267 = vsel %vm255, %v249, %v266
        %v268 = vsel %vm254, %v265, %v267
        %v269 = vshll.u32 %v229, 8
        %v270 = vmul.u32.u64.compose %v269, %v268
        %v271 = vextract.low.u32 %v270
        %v272 = vextract.high.u32 %v270
        %v273 = vmul.u32.u64.compose %v269, %v264
        %v274 = vextract.low.u32 %v273
        %v275 = vextract.high.u32 %v273
        %v276 = vmul.u32 %v269, %v260
        %v277 = vadd.s32 %v272, %v274
        %vm278 = vc.u32 %v272, %v274
        %v279 = vadd.s32 %v275, 1
        %v280 = vsel %vm278, %v279, %v275
        %v281 = vadd.s32 %v276, %v280
        %v282 = vadd.s32 %v281, 536870912
        %v283 = vshrl.u32 %v282, 30
        %v284 = vshll.u32 %v283, 30
        %v285 = vsub.s32 %v281, %v284
        %vm286 = vcmp.lt.s32.totalorder %v285, 0
        %v287 = vsub.s32 0, %v285
        %v288 = vsel %vm286, %v287, %v285
        %v289 = vclz %v288
        %v290 = vsub.s32 %v289, 2
        %vm291 = vcmp.gt.s32.totalorder 0, %v290
        %v292 = vsel %vm291, 0, %v290
        %v293 = vsub.s32 32, %v292
        %v294 = vshll.u32 %v285, %v292
        %v295 = vshrl.u32 %v277, %v293
        %v296 = vor.u32 %v294, %v295
        %v297 = vsub.s32 4294967266, %v292
        %v298 = vadd.s32 %v297, 127
        %v299 = vshll.u32 %v298, 23
        %v300 = vor.u32 4788187, %v299
        %v301 = vand.u32 2147483647, %v300
        %v303 = vcvt.s32.f32 %v296
        %v304 = vmul.f32 %v303, %v301
        %v305 = vxor.u32 %v304, 2147483648
        %v306 = vsel %vm223, %v305, %v304
        %v307 = vsub.s32 4, %v283
        %v308 = vsel %vm223, %v307, %v283
        %v309 = vsel %vm222, %v220, %v306
        %v310 = vsel %vm222, 0, %v308
        %v311 = vcosq.f32.pop %v309
        %v312 = vsinq.f32.pop %v309
        %vm313 = vweird.f32 %v220
        %v314 = vadd.s32 %v310, 3
        %v315 = vand.u32 %v314, 3
        %vm316 = vcmp.lt.s32.totalorder %v315, 2
        %vm317 = vcmp.eq.s32.totalorder %v315, 0
        %v318 = vxor.u32 %v312, 2147483648
        %v319 = vsel %vm317, %v311, %v318
        %vm320 = vcmp.eq.s32.totalorder %v315, 2
        %v321 = vxor.u32 %v311, 2147483648
        %v322 = vsel %vm320, %v321, %v312
        %v323 = vsel %vm316, %v319, %v322
        %v324 = vsel %vm313, nan, %v323
        %325 = vst [vmem:[%s183] sm:$0xff] %v324
        %s326 = sand.u32 %s109, 1
        %s327 = scalar_lea.sflag [#allocation3], %s326
        %s328 = sand.u32 %s109, 1
        %s329 = smul.addr %s328, 8
        %s330 = scalar_lea.vmem [#allocation2], %s329
        // Predicated region
        $region33: #{tpu_custom_call.1} parent=31 // pred_check
          %p331 = pneg %p119
        $region34: #{tpu_custom_call.1} parent=31 // pred_check_branch
          %333 = sbr.rel (%p331) target = $region36
        $region35: #{tpu_custom_call.1} parent=31 // pred_region
          %s335 = ssub.s32 128, 128
          %336 = vsyncadd %s327, %s335
          %s337 = sadd.s32 %s22, %s21
          %s338 = smul.addr %s337, 128
          %s339 = scalar_lea.hbm %s3, %s338
          %s341 = sshll.u32 %s330, 4
          %s342 = int_to_ptr.vmem [resolvable:$true] %s341
          %344 = dma.vmem_to_hbm [thread:$0]  %s342, 128, %s339, %s327
        $region36: #{tpu_custom_call.1} parent=31 // pred_fallthru
          _
      $region32: #{tpu_custom_call.1} parent=5 // pred_fallthru
        _
      %p345 = scmp.le.s32.totalorder 2, %s12
      // Predicated region
      $region37: #{tpu_custom_call.1} parent=5 // pred_check
        %p346 = pneg %p345
      $region38: #{tpu_custom_call.1} parent=5 // pred_check_branch
        %348 = sbr.rel (%p346) target = $region40
      $region39: #{tpu_custom_call.1} parent=5 // pred_region
        %s349 = ssub.s32 %s12, 2
        // Predicated region
        $region41: #{tpu_custom_call.1} parent=39 // pred_check
          %p350 = pneg %p125
        $region42: #{tpu_custom_call.1} parent=39 // pred_check_branch
          %352 = sbr.rel (%p350) target = $region44
        $region43: #{tpu_custom_call.1} parent=39 // pred_region
          %s353 = sand.u32 %s110, 1
          %s354 = scalar_lea.sflag [#allocation3], %s353
          %s355 = sand.u32 %s110, 1
          %s356 = smul.addr %s355, 8
          %s357 = scalar_lea.vmem [#allocation2], %s356
          %358 = dma.done %s354, 128
        $region44: #{tpu_custom_call.1} parent=39 // pred_fallthru
          _
      $region40: #{tpu_custom_call.1} parent=5 // pred_fallthru
        _
    $region6: #{tpu_custom_call.1} parent=1 // loop_footer
      %s16 = sadd.s32 1, %s12
    $region7: #{tpu_custom_call.1} parent=1 // loop_footer_branch
      %11 = sbr.rel target = $region3
    $region8: #{tpu_custom_call.1} parent=1 // loop_exit
      _
    %359 = vsyncpa [#allocation3], 1
    %s360 = scalar_lea.sflag [#allocation3], 1
    %361 = vsyncpa %s360, 1

</llo_original>
